<compile_context>
chip_gen: v7x
topology: tpu7x:2x2x1
jax: 0.10.0
libtpu: 0.0.40
codegen_flags: <defaults>
</compile_context>

<pallas_src>
import functools

import jax
import jax.numpy as jnp
from jax.experimental import pallas as pl
from jax.experimental.pallas import tpu as pltpu

_MiB = 1024 * 1024


def attention_kernel(hp_ref, enc_ref, w2_ref, v_ref, ctx_ref, attw_ref, *,
                     s_valid):
    # hp_ref:   (TB, H)      precomputed hidden @ W1 + bias for this batch tile
    # enc_ref:  (TB, S, E)   encoder outputs for this batch tile
    # w2_ref:   (E, H)       encoder part of W (resident across grid steps)
    # v_ref:    (1, H)       v weight as a row
    # ctx_ref:  (TB, E)      context output
    # attw_ref: (TB, S)      lane-dense attention-weights output
    TB, S, E = enc_ref.shape
    H = hp_ref.shape[-1]

    enc = enc_ref[...]                                        # (TB, S, E)

    # One MXU matmul over all TB*S rows of the tile.  The reshape is
    # layout-free because the wrapper guarantees S % sublane_packing == 0.
    proj = jnp.dot(enc.reshape(TB * S, E), w2_ref[...],
                   preferred_element_type=jnp.float32)        # (TB*S, H) f32

    # energy = tanh(hidden_proj + enc_proj); hidden part is a broadcast add.
    energy = jnp.tanh(proj.reshape(TB, S, H) + hp_ref[...][:, None, :])

    # Scores: VPU multiply + lane (last-axis) reduction -> lane-dense (TB, S).
    att = jnp.sum(energy * v_ref[...].reshape(1, 1, H), axis=-1)

    if s_valid < S:  # static branch: mask sequence positions added by S-pad
        col = jax.lax.broadcasted_iota(jnp.int32, (TB, S), 1)
        att = jnp.where(col < s_valid, att, -jnp.inf)

    # Exact softmax over the sequence axis on the (TB, S) slab.
    m = jnp.max(att, axis=-1, keepdims=True)                  # (TB, 1)
    e = jnp.exp(att - m)                                      # (TB, S)
    w = e / jnp.sum(e, axis=-1, keepdims=True)                # (TB, S), exact

    # context = sum_s w[b, s] * enc[b, s, :]  (VPU mul + sublane reduce).
    ctx = jnp.sum(w[:, :, None] * enc.astype(jnp.float32), axis=1)   # (TB, E)

    ctx_ref[...] = ctx.astype(ctx_ref.dtype)
    attw_ref[...] = w.astype(attw_ref.dtype)


def _device_vmem_plan():
    """Returns (num_tensorcores, per-step live-VMEM budget, vmem_limit_bytes)."""
    kind = ""
    try:
        kind = jax.devices()[0].device_kind.lower()
    except Exception:
        pass
    if "v7" in kind:
        # v7x: 2 TCs/chip but only 64 MiB VMEM per TC -> modest live budget.
        return 2, 20 * _MiB, 48 * _MiB
    # v5e / v6e: single TC, 128 MiB physical VMEM; raise the scoped limit
    # above the 16 / 32 MiB defaults so larger tiles are allowed.
    return 1, 40 * _MiB, 64 * _MiB


def _choose_batch_tile(B, S, E, H, enc_itemsize, num_cores, vmem_budget):
    """Largest divisor of B whose per-step live VMEM fits the budget.

    The kernel is HBM-bound; the tile only has to amortize per-step pipeline
    overhead, so we size it by bytes, not MXU rows.  Live bytes per batch row:
      enc tile double-buffered (2x) + the w*enc product temp (1x)   -> 3x enc
      enc_proj / energy / broadcast-hid f32 intermediates           -> 3x S*H*4
    """
    live_per_b = 3 * S * E * enc_itemsize + 3 * S * H * 4
    cap = max(1, vmem_budget // max(live_per_b, 1))
    if num_cores >= 2 and B >= 2:
        # v7x only: keep >=2 grid steps so both TensorCores get work.
        cap = min(cap, B // 2)
    cap = min(cap, B)
    if cap >= B:
        return B
    # Largest divisor of B <= cap (no batch padding); prefer multiples of 8
    # so the second-to-last block dim stays sublane-aligned.
    best, best_aligned = 1, 0
    for d in range(1, cap + 1):
        if B % d == 0:
            best = d
            if d % 8 == 0:
                best_aligned = d
    return best_aligned if best_aligned else best


def attention_forward(hidden, encoder_outputs, w_weight, w_bias, v_weight, *,
                      compute_dtype=None):
    """Mirrors Attention.forward.

    hidden:           (B, H)
    encoder_outputs:  (B, S, E)
    w_weight:         (H, H + E)   torch nn.Linear weight (out, in)
    w_bias:           (H,)
    v_weight:         (1, H)       torch nn.Linear weight, no bias
    compute_dtype:    optionally jnp.bfloat16 to halve HBM traffic of the
                      dominant encoder tensor (accumulation stays f32).
    returns (context (B, E), attention_weights (B, S))
    """
    B, H = hidden.shape
    _, S, E = encoder_outputs.shape
    out_dtype = hidden.dtype

    enc_dtype = (jnp.dtype(compute_dtype) if compute_dtype is not None
                 else encoder_outputs.dtype)

    # torch Linear computes x @ weight.T + bias; split the transposed weight
    # into the hidden part and the encoder part (concat order: hidden, enc).
    w_t = w_weight.T                      # (H + E, H)
    w1 = w_t[:H, :]                       # (H, H)
    w2 = w_t[H:, :].astype(enc_dtype)     # (E, H)

    # Hoist the S-invariant hidden projection out of the kernel: one big
    # (B, H) @ (H, H) matmul for the whole batch.
    hid_proj = (hidden @ w1 + w_bias[None, :]).astype(jnp.float32)   # (B, H)

    enc_in = encoder_outputs.astype(enc_dtype)
    v_in = v_weight.astype(jnp.float32)

    # Keep the in-kernel (TB,S,E)<->(TB*S,E) reshapes layout-free: S must be a
    # multiple of the sublane packing (8 for f32, 16 for bf16).  Pads only
    # when needed; padded positions are masked to -inf before the softmax.
    sublanes = 16 if enc_dtype == jnp.bfloat16 else 8
    S_pad = -(-S // sublanes) * sublanes
    if S_pad != S:
        enc_in = jnp.pad(enc_in, ((0, 0), (0, S_pad - S), (0, 0)))

    num_cores, budget, vmem_limit = _device_vmem_plan()
    TB = _choose_batch_tile(B, S_pad, E, H, enc_in.dtype.itemsize,
                            num_cores, budget)
    grid_b = B // TB          # TB divides B: no batch padding, no extra copy

    kernel = functools.partial(attention_kernel, s_valid=S)

    ctx, attw = pl.pallas_call(
        kernel,
        out_shape=(
            jax.ShapeDtypeStruct((B, E), out_dtype),
            jax.ShapeDtypeStruct((B, S_pad), out_dtype),
        ),
        grid_spec=pltpu.PrefetchScalarGridSpec(
            num_scalar_prefetch=0,
            grid=(grid_b,),
            in_specs=[
                pl.BlockSpec((TB, H), lambda b: (b, 0)),            # hid_proj
                pl.BlockSpec((TB, S_pad, E), lambda b: (b, 0, 0)),  # encoder
                pl.BlockSpec((E, H), lambda b: (0, 0)),             # w2
                pl.BlockSpec((1, H), lambda b: (0, 0)),             # v row
            ],
            out_specs=[
                pl.BlockSpec((TB, E), lambda b: (b, 0)),            # context
                pl.BlockSpec((TB, S_pad), lambda b: (b, 0)),        # attn w
            ],
        ),
        compiler_params=pltpu.CompilerParams(
            dimension_semantics=("parallel",),
            vmem_limit_bytes=int(vmem_limit)),
    )(hid_proj, enc_in, w2, v_in)

    if S_pad != S:
        attw = attw[:, :S]
    return ctx, attw


def attention_reference(hidden, encoder_outputs, w_weight, w_bias, v_weight):
    """Plain-JAX reference matching the PyTorch forward exactly."""
    B, H = hidden.shape
    _, S, E = encoder_outputs.shape
    hid = jnp.broadcast_to(hidden[:, None, :], (B, S, H))
    cat = jnp.concatenate([hid, encoder_outputs], axis=2)      # (B, S, H+E)
    energy = jnp.tanh(cat @ w_weight.T + w_bias)               # (B, S, H)
    attention = (energy @ v_weight.T)[..., 0]                  # (B, S)
    attw = jax.nn.softmax(attention, axis=1)                   # (B, S)
    context = jnp.einsum("bs,bse->be", attw, encoder_outputs)  # (B, E)
    return context, attw


if __name__ == "__main__":
    B, S = 2, 8
    hidden_size = 32          # H
    encoder_hidden_size = 32  # E

    key = jax.random.PRNGKey(0)
    k_h, k_e, k_w, k_b, k_v = jax.random.split(key, 5)

    hidden = jax.random.normal(k_h, (B, hidden_size), dtype=jnp.float32)
    encoder_outputs = jax.random.normal(
        k_e, (B, S, encoder_hidden_size), dtype=jnp.float32)

    # Deterministic synthetic parameters (same shapes as the torch module).
    fan_in = hidden_size + encoder_hidden_size
    w_weight = jax.random.uniform(
        k_w, (hidden_size, fan_in), dtype=jnp.float32,
        minval=-1.0, maxval=1.0) / jnp.sqrt(fan_in)
    w_bias = jax.random.uniform(
        k_b, (hidden_size,), dtype=jnp.float32,
        minval=-1.0, maxval=1.0) / jnp.sqrt(fan_in)
    v_weight = jax.random.uniform(
        k_v, (1, hidden_size), dtype=jnp.float32,
        minval=-1.0, maxval=1.0) / jnp.sqrt(hidden_size)

    ctx, attw = attention_forward(hidden, encoder_outputs, w_weight, w_bias,
                                  v_weight)
    jax.block_until_ready((ctx, attw))

    ctx_ref, attw_ref = attention_reference(hidden, encoder_outputs, w_weight,
                                            w_bias, v_weight)

    assert ctx.shape == (B, encoder_hidden_size)
    assert attw.shape == (B, S)
    # Exact softmax (no approximate reciprocal) -> tight tolerances.
    assert jnp.allclose(ctx, ctx_ref, atol=1e-5, rtol=1e-5)
    assert jnp.allclose(attw, attw_ref, atol=1e-5, rtol=1e-5)
    assert jnp.allclose(jnp.sum(attw, axis=1), jnp.ones((B,)), atol=1e-6)

    print("KERNEL_OK")
</pallas_src>

<mosaic_0001>
module attributes {stable_mosaic.version = 11 : i64} {
  func.func @attention_kernel(%arg0: i32, %arg1: memref<2x32xf32, #tpu.memory_space<vmem>>, %arg2: memref<2x8x32xf32, #tpu.memory_space<vmem>>, %arg3: memref<32x32xf32, #tpu.memory_space<vmem>>, %arg4: memref<1x32xf32, #tpu.memory_space<vmem>>, %arg5: memref<2x32xf32, #tpu.memory_space<vmem>>, %arg6: memref<2x8xf32, #tpu.memory_space<vmem>>) attributes {dimension_semantics = [#tpu.dimension_semantics<parallel>], iteration_bounds = array<i64: 1>, scalar_prefetch = 0 : i64, scratch_operands = 0 : i64, tpu.core_type = #tpu.core_type<tc>, window_params = [{transform_indices = @transform_0, window_bounds = array<i64: 2, 32>}, {transform_indices = @transform_1, window_bounds = array<i64: 2, 8, 32>}, {pipeline_mode = #tpu.pipeline_mode<synchronous>, transform_indices = @transform_2, window_bounds = array<i64: 32, 32>}, {pipeline_mode = #tpu.pipeline_mode<synchronous>, transform_indices = @transform_3, window_bounds = array<i64: 1, 32>}, {transform_indices = @transform_4, window_bounds = array<i64: 2, 32>}, {transform_indices = @transform_5, window_bounds = array<i64: 2, 8>}]} {
    %c0 = arith.constant 0 : index
    %c0_0 = arith.constant 0 : index
    %c0_1 = arith.constant 0 : index
    %0 = vector.load %arg2[%c0, %c0_0, %c0_1] : memref<2x8x32xf32, #tpu.memory_space<vmem>>, vector<2x8x32xf32>
    %1 = vector.shape_cast %0 : vector<2x8x32xf32> to vector<16x32xf32>
    %c0_2 = arith.constant 0 : index
    %c0_3 = arith.constant 0 : index
    %2 = vector.load %arg3[%c0_2, %c0_3] : memref<32x32xf32, #tpu.memory_space<vmem>>, vector<32x32xf32>
    %cst = arith.constant dense<0.000000e+00> : vector<16x32xf32>
    %3 = tpu.matmul %1, %2, %cst {dimension_numbers = #tpu.dot_dimension_numbers<[1], [0], [0], [1], [0, 0, 1, 1], [], []>} : vector<16x32xf32>, vector<32x32xf32>, vector<16x32xf32> -> vector<16x32xf32>
    %4 = vector.shape_cast %3 : vector<16x32xf32> to vector<2x8x32xf32>
    %c0_4 = arith.constant 0 : index
    %c0_5 = arith.constant 0 : index
    %5 = vector.load %arg1[%c0_4, %c0_5] : memref<2x32xf32, #tpu.memory_space<vmem>>, vector<2x32xf32>
    %6 = vector.shape_cast %5 : vector<2x32xf32> to vector<2x1x32xf32>
    %7 = vector.broadcast %6 : vector<2x1x32xf32> to vector<2x8x32xf32>
    %8 = arith.addf %4, %7 : vector<2x8x32xf32>
    %9 = math.tanh %8 : vector<2x8x32xf32>
    %c0_6 = arith.constant 0 : index
    %c0_7 = arith.constant 0 : index
    %10 = vector.load %arg4[%c0_6, %c0_7] : memref<1x32xf32, #tpu.memory_space<vmem>>, vector<1x32xf32>
    %11 = vector.shape_cast %10 : vector<1x32xf32> to vector<1x1x32xf32>
    %12 = vector.broadcast %11 : vector<1x1x32xf32> to vector<2x8x32xf32>
    %13 = arith.mulf %9, %12 : vector<2x8x32xf32>
    %cst_8 = arith.constant dense<0.000000e+00> : vector<2x8xf32>
    %14 = vector.multi_reduction <add>, %13, %cst_8 [2] : vector<2x8x32xf32> to vector<2x8xf32>
    %cst_9 = arith.constant dense<0xFF800000> : vector<2xf32>
    %15 = vector.multi_reduction <maximumf>, %14, %cst_9 [1] : vector<2x8xf32> to vector<2xf32>
    %16 = vector.shape_cast %15 : vector<2xf32> to vector<2x1xf32>
    %17 = vector.broadcast %16 : vector<2x1xf32> to vector<2x8xf32>
    %18 = arith.subf %14, %17 : vector<2x8xf32>
    %19 = math.exp %18 : vector<2x8xf32>
    %cst_10 = arith.constant dense<0.000000e+00> : vector<2xf32>
    %20 = vector.multi_reduction <add>, %19, %cst_10 [1] : vector<2x8xf32> to vector<2xf32>
    %21 = vector.shape_cast %20 : vector<2xf32> to vector<2x1xf32>
    %22 = vector.broadcast %21 : vector<2x1xf32> to vector<2x8xf32>
    %23 = arith.divf %19, %22 : vector<2x8xf32>
    %24 = vector.shape_cast %23 : vector<2x8xf32> to vector<2x8x1xf32>
    %25 = vector.broadcast %24 : vector<2x8x1xf32> to vector<2x8x32xf32>
    %26 = arith.mulf %25, %0 : vector<2x8x32xf32>
    %cst_11 = arith.constant dense<0.000000e+00> : vector<2x32xf32>
    %27 = vector.multi_reduction <add>, %26, %cst_11 [1] : vector<2x8x32xf32> to vector<2x32xf32>
    %c0_12 = arith.constant 0 : index
    %c0_13 = arith.constant 0 : index
    %28 = vector.load %arg5[%c0_12, %c0_13] : memref<2x32xf32, #tpu.memory_space<vmem>>, vector<2x32xf32>
    tpu.vector_store %arg5[%c0_12, %c0_13], %27 {strides = array<i32>} : memref<2x32xf32, #tpu.memory_space<vmem>>, vector<2x32xf32>,
    %c0_14 = arith.constant 0 : index
    %c0_15 = arith.constant 0 : index
    %29 = vector.load %arg6[%c0_14, %c0_15] : memref<2x8xf32, #tpu.memory_space<vmem>>, vector<2x8xf32>
    tpu.vector_store %arg6[%c0_14, %c0_15], %23 {strides = array<i32>} : memref<2x8xf32, #tpu.memory_space<vmem>>, vector<2x8xf32>,
    return
  }
  func.func @transform_0(%arg0: i32) -> (i32, i32) {
    %c0_i32 = arith.constant 0 : i32
    %c0_i32_0 = arith.constant 0 : i32
    return %arg0, %c0_i32 : i32, i32
  }
  func.func @transform_1(%arg0: i32) -> (i32, i32, i32) {
    %c0_i32 = arith.constant 0 : i32
    %c0_i32_0 = arith.constant 0 : i32
    %c0_i32_1 = arith.constant 0 : i32
    return %arg0, %c0_i32, %c0_i32_0 : i32, i32, i32
  }
  func.func @transform_2(%arg0: i32) -> (i32, i32) {
    %c0_i32 = arith.constant 0 : i32
    %c0_i32_0 = arith.constant 0 : i32
    %c0_i32_1 = arith.constant 0 : i32
    return %c0_i32, %c0_i32_0 : i32, i32
  }
  func.func @transform_3(%arg0: i32) -> (i32, i32) {
    %c0_i32 = arith.constant 0 : i32
    %c0_i32_0 = arith.constant 0 : i32
    %c0_i32_1 = arith.constant 0 : i32
    return %c0_i32, %c0_i32_0 : i32, i32
  }
  func.func @transform_4(%arg0: i32) -> (i32, i32) {
    %c0_i32 = arith.constant 0 : i32
    %c0_i32_0 = arith.constant 0 : i32
    return %arg0, %c0_i32 : i32, i32
  }
  func.func @transform_5(%arg0: i32) -> (i32, i32) {
    %c0_i32 = arith.constant 0 : i32
    %c0_i32_0 = arith.constant 0 : i32
    return %arg0, %c0_i32 : i32, i32
  }
}

</mosaic_0001>

<llo_original>
// kernel: tpu_custom_call.1
$region0: #{tpu_custom_call.1}
  #allocation0 [shape = 'u32[]', space=smem, size = 0x4, offset = 0x4, fixed_abs, tag = 'smem constant byte address 0x4 - core index']
  #allocation1 [shape = 'u32[144,128]{1,0:T(1,128)}', space=vmem, size = 0x12000, scoped, tag = 'internal scratch']
  %s0 = inlined_call_operand.hbm [shape: f32[2,32], index: 0, kind: input, shape index: {}]
  %s1 = inlined_call_operand.hbm [shape: f32[2,8,32], index: 1, kind: input, shape index: {}]
  %s2 = inlined_call_operand.hbm [shape: f32[32,32], index: 2, kind: input, shape index: {}]
  %s3 = inlined_call_operand.hbm [shape: f32[1,32], index: 3, kind: input, shape index: {}]
  %s4 = inlined_call_operand.hbm [shape: f32[2,32], index: 4, kind: output, shape index: {0}]
  %s5 = inlined_call_operand.hbm [shape: f32[2,8], index: 5, kind: output, shape index: {1}]
  %6 = xla_tuple %s4, %s5
  %s7 = sld [smem:[#allocation0]]
  $region50: #{tpu_custom_call.1} parent=0
    _
  %s9 = ssub.s32 1, %s7
  %s10 = scalar_select 0, %s9, %s7
  $region1: #{tpu_custom_call.1} parent=0
    #allocation2 [shape = 'u8[1024]{0}', space=vmem, size = 0x400, scoped, tag = 'input window, operand 0, single buffered']
    #allocation3 [shape = 's32[1]{0}', space=sflag, size = 0x4, scoped, tag = 'scoped memory for tpu_custom_call.1']
    #allocation4 [shape = 's32[1]{0}', space=sflag, size = 0x4, scoped, tag = 'scoped memory for tpu_custom_call.1']
    #allocation5 [shape = 'u8[8192]{0}', space=vmem, size = 0x2000, scoped, tag = 'input window, operand 1, single buffered']
    #allocation6 [shape = 's32[1]{0}', space=sflag, size = 0x4, scoped, tag = 'scoped memory for tpu_custom_call.1']
    #allocation7 [shape = 'u8[16384]{0}', space=vmem, size = 0x4000, scoped, tag = 'input window, operand 2, single buffered']
    #allocation8 [shape = 'u8[512]{0}', space=vmem, size = 0x400, scoped, tag = 'input window, operand 3, single buffered']
    #allocation9 [shape = 's32[1]{0}', space=sflag, size = 0x4, scoped, tag = 'scoped memory for tpu_custom_call.1']
    #allocation10 [shape = 'u8[1024]{0}', space=vmem, size = 0x400, scoped, tag = 'output window, operand 0, single buffered']
    #allocation11 [shape = 'u8[1024]{0}', space=vmem, size = 0x400, scoped, tag = 'output window, operand 1, single buffered']
    #allocation12 [shape = 's32[1]{0}', space=sflag, size = 0x4, scoped, tag = 'scoped memory for tpu_custom_call.1']
    %11 = vsyncpa [#allocation3], 0
    %12 = vsyncpa [#allocation6], 0
    %13 = vsyncpa [#allocation9], 0
    %14 = vsyncpa [#allocation4], 0
    %15 = vsyncpa [#allocation12], 0
    // Predicated region
    $region2: #{tpu_custom_call.1} parent=1 // pred_check
      _
    $region3: #{tpu_custom_call.1} parent=1 // pred_check_branch
      %17 = sbr.rel (0) target = $region5
    $region4: #{tpu_custom_call.1} parent=1 // pred_region
      %s19 = ssub.s32 32, 32
      %20 = vsyncadd [#allocation3], %s19
      %s22 = sshll.u32 [#allocation2], 4
      %s23 = int_to_ptr.vmem [resolvable:$true] %s22
      %25 = dma.hbm_to_vmem [thread:$0]  %s0, 32, %s23, [#allocation3]
    $region5: #{tpu_custom_call.1} parent=1 // pred_fallthru
      _
    // Predicated region
    $region6: #{tpu_custom_call.1} parent=1 // pred_check
      _
    $region7: #{tpu_custom_call.1} parent=1 // pred_check_branch
      %27 = sbr.rel (0) target = $region9
    $region8: #{tpu_custom_call.1} parent=1 // pred_region
      %s29 = ssub.s32 256, 256
      %30 = vsyncadd [#allocation6], %s29
      %s31 = sshll.u32 [#allocation5], 4
      %s32 = int_to_ptr.vmem [resolvable:$true] %s31
      %37 = dma.hbm_to_vmem [thread:$0]  %s1, 256, %s32, [#allocation6], 128, 128, 8
    $region9: #{tpu_custom_call.1} parent=1 // pred_fallthru
      _
    // Predicated region
    $region10: #{tpu_custom_call.1} parent=1 // pred_check
      _
    $region11: #{tpu_custom_call.1} parent=1 // pred_check_branch
      %39 = sbr.rel (0) target = $region13
    $region12: #{tpu_custom_call.1} parent=1 // pred_region
      %s41 = ssub.s32 512, 512
      %42 = vsyncadd [#allocation6], %s41
      %s43 = sshll.u32 [#allocation7], 4
      %s44 = int_to_ptr.vmem [resolvable:$true] %s43
      %49 = dma.hbm_to_vmem [thread:$0]  %s2, 512, %s44, [#allocation6], 128, 128, 8
    $region13: #{tpu_custom_call.1} parent=1 // pred_fallthru
      _
    // Predicated region
    $region14: #{tpu_custom_call.1} parent=1 // pred_check
      _
    $region15: #{tpu_custom_call.1} parent=1 // pred_check_branch
      %51 = sbr.rel (0) target = $region17
    $region16: #{tpu_custom_call.1} parent=1 // pred_region
      %s53 = ssub.s32 16, 16
      %54 = vsyncadd [#allocation9], %s53
      %s56 = sshll.u32 [#allocation8], 4
      %s57 = int_to_ptr.vmem [resolvable:$true] %s56
      %59 = dma.hbm_to_vmem [thread:$0]  %s3, 16, %s57, [#allocation9]
    $region17: #{tpu_custom_call.1} parent=1 // pred_fallthru
      _
    // Predicated region
    $region18: #{tpu_custom_call.1} parent=1 // pred_check
      _
    $region19: #{tpu_custom_call.1} parent=1 // pred_check_branch
      %61 = sbr.rel (0) target = $region21
    $region20: #{tpu_custom_call.1} parent=1 // pred_region
      %62 = dma.done [#allocation3], 32
    $region21: #{tpu_custom_call.1} parent=1 // pred_fallthru
      _
    // Predicated region
    $region22: #{tpu_custom_call.1} parent=1 // pred_check
      _
    $region23: #{tpu_custom_call.1} parent=1 // pred_check_branch
      %64 = sbr.rel (0) target = $region25
    $region24: #{tpu_custom_call.1} parent=1 // pred_region
      %65 = dma.done [#allocation6], 256
    $region25: #{tpu_custom_call.1} parent=1 // pred_fallthru
      _
    // Predicated region
    $region26: #{tpu_custom_call.1} parent=1 // pred_check
      _
    $region27: #{tpu_custom_call.1} parent=1 // pred_check_branch
      %67 = sbr.rel (0) target = $region29
    $region28: #{tpu_custom_call.1} parent=1 // pred_region
      %68 = dma.done [#allocation6], 512
    $region29: #{tpu_custom_call.1} parent=1 // pred_fallthru
      _
    // Predicated region
    $region30: #{tpu_custom_call.1} parent=1 // pred_check
      _
    $region31: #{tpu_custom_call.1} parent=1 // pred_check_branch
      %70 = sbr.rel (0) target = $region33
    $region32: #{tpu_custom_call.1} parent=1 // pred_region
      %71 = dma.done [#allocation9], 16
    $region33: #{tpu_custom_call.1} parent=1 // pred_fallthru
      _
    %v72 = vld [vmem:[#allocation5] sm:$0xff]
    %v73 = vld [vmem:[#allocation5 + $0x8] sm:$0xff]
    %v74 = vld [vmem:[#allocation7] sm:$0xff]
    %v75 = vld [vmem:[#allocation7 + $0x8] sm:$0xff]
    %v76 = vld [vmem:[#allocation7 + $0x10] sm:$0xff]
    %v77 = vld [vmem:[#allocation7 + $0x18] sm:$0xff]
    %vm78 = vcmask 261120
    %v80 = vsel %vm78, %v72, 0
    %v83 = vsel %vm78, %v73, 0
    %85 = vmatprep.subr.mxu0 0.0
    %86 = vmatpush1.msra.mxu0 %v74
    %87 = vmatprep.subr.mxu0 0.0
    %88 = vmatpush1.msra.mxu0 %v75
    %89 = vmatprep.subr.mxu0 0.0
    %90 = vmatpush1.msra.mxu0 %v76
    %91 = vmatprep.subr.mxu0 0.0
    %92 = vmatpush1.msra.mxu0 %v77
    %93 = vmatprep.subr.mxu0 0.0
    %94 = vmatpush1.msra.mxu0 0.0
    %95 = vmatprep.subr.mxu0 0.0
    %96 = vmatpush1.msra.mxu0 0.0
    %97 = vmatprep.subr.mxu0 0.0
    %98 = vmatpush1.msra.mxu0 0.0
    %99 = vmatprep.subr.mxu0 0.0
    %100 = vmatpush1.msra.mxu0 0.0
    %101 = vmatprep.subr.mxu0 0.0
    %102 = vmatpush1.msra.mxu0 0.0
    %103 = vmatprep.subr.mxu0 0.0
    %104 = vmatpush1.msra.mxu0 0.0
    %105 = vmatprep.subr.mxu0 0.0
    %106 = vmatpush1.msra.mxu0 0.0
    %107 = vmatprep.subr.mxu0 0.0
    %108 = vmatpush1.msra.mxu0 0.0
    %109 = vmatprep.subr.mxu0 0.0
    %110 = vmatpush1.msra.mxu0 0.0
    %111 = vmatprep.subr.mxu0 0.0
    %112 = vmatpush1.msra.mxu0 0.0
    %113 = vmatprep.subr.mxu0 0.0
    %114 = vmatpush1.msra.mxu0 0.0
    %115 = vmatprep.subr.mxu0 0.0
    %116 = vmatpush1.msra.mxu0 0.0
    %117 = vmatprep.subr.mxu0 0.0
    %118 = vmatpush1.msra.mxu0 0.0
    %119 = vmatprep.subr.mxu0 0.0
    %120 = vmatpush1.msra.mxu0 0.0
    %121 = vmatprep.subr.mxu0 0.0
    %122 = vmatpush1.msra.mxu0 0.0
    %123 = vmatprep.subr.mxu0 0.0
    %124 = vmatpush1.msra.mxu0 0.0
    %125 = vmatprep.subr.mxu0 0.0
    %126 = vmatpush1.msra.mxu0 0.0
    %127 = vmatprep.subr.mxu0 0.0
    %128 = vmatpush1.msra.mxu0 0.0
    %129 = vmatprep.subr.mxu0 0.0
    %130 = vmatpush1.msra.mxu0 0.0
    %131 = vmatprep.subr.mxu0 0.0
    %132 = vmatpush1.msra.mxu0 0.0
    %133 = vmatprep.subr.mxu0 0.0
    %134 = vmatpush1.msra.mxu0 0.0
    %135 = vmatprep.subr.mxu0 0.0
    %136 = vmatpush1.msra.mxu0 0.0
    %137 = vmatprep.subr.mxu0 0.0
    %138 = vmatpush1.msra.mxu0 0.0
    %139 = vmatprep.subr.mxu0 0.0
    %140 = vmatpush1.msra.mxu0 0.0
    %141 = vmatprep.subr.mxu0 0.0
    %142 = vmatpush1.msra.mxu0 0.0
    %143 = vmatprep.subr.mxu0 0.0
    %144 = vmatpush1.msra.mxu0 0.0
    %145 = vmatprep.subr.mxu0 0.0
    %146 = vmatpush1.msra.mxu0 0.0
    %147 = vmatprep.subr.mxu0 0.0
    %148 = vmatpush1.msra.mxu0 0.0
    %149 = vmatprep.mubr.f32.mxu0 0.0
    %150 = vmatmul.mubr.f32.gmra.mrb[0].mxu0 %v80
    %v151 = vpop.f32.mrb[0].mxu0
    %v152 = vadd.f32 0.0, %v151
    %v153 = vpop.f32.mrb[0].mxu0
    %154 = vmatprep.mubr.f32.mxu0 0.0
    %155 = vmatmul.mubr.f32.gmra.mrb[0].mxu0 %v83
    %v156 = vpop.f32.mrb[0].mxu0
    %v157 = vadd.f32 0.0, %v156
    %v158 = vpop.f32.mrb[0].mxu0
    %159 = vdwg.mxu0
    %v160 = vld [vmem:[#allocation2] sm:$0x3]
    %v163 = vunpack.c.l.s4 1966171168
    %v164 = vunpack.c.0.s8 %v163
    %v165 = vlaneseq
    %v166 = vshrl.u32 %v165, 7
    %v167 = vsub.s32 %v164, %v166
    %v168 = vrot.slane %v160, %v167
    %v169 = vcombine.high %v168, %v168
    %v171 = vunpack.c.l.s4 1966171168
    %v172 = vunpack.c.0.s8 %v171
    %v173 = vlaneseq
    %v174 = vshrl.u32 %v173, 7
    %v175 = vsub.s32 %v172, %v174
    %v176 = vrot.slane %v168, %v175
    %v178 = vunpack.c.l.s4 1966171168
    %v179 = vunpack.c.0.s8 %v178
    %v180 = vlaneseq
    %v181 = vshrl.u32 %v180, 7
    %v182 = vsub.s32 %v179, %v181
    %v183 = vrot.slane %v169, %v182
    %v184 = vlaneseq
    %v185 = vshrl.u32 %v184, 7
    %v186 = vsub.s32 0, %v185
    %v187 = vrot.slane %v176, %v186
    %v188 = vlaneseq
    %v189 = vshrl.u32 %v188, 7
    %v190 = vsub.s32 0, %v189
    %v191 = vrot.slane %v183, %v190
    %v194 = vadd.f32 %v152, %v187
    %v195 = vadd.f32 %v157, %v191
    %v196 = vtanh.pop %v194
    %v197 = vtanh.pop %v195
    %v198 = vld [vmem:[#allocation8] sm:$0x1]
    %v200 = vlaneseq
    %v201 = vshrl.u32 %v200, 7
    %v202 = vsub.s32 0, %v201
    %v203 = vrot.slane %v198, %v202
    %v205 = vmul.f32 %v196, %v203
    %v206 = vmul.f32 %v197, %v203
    %v207 = vsel %vm78, %v205, 0.0
    %208 = vadd.xlane.f32.xlu0 %v207
    %v209 = vpop.xlane.xlu0 %208
    %v210 = vsel %vm78, %v206, 0.0
    %211 = vadd.xlane.f32.xlu0 %v210
    %v212 = vpop.xlane.xlu0 %211
    %v215 = vlaneseq
    %v216 = vand.u32 %v215, 127
    %v217 = vlaneseq
    %v218 = vshrl.u32 %v217, 7
    %v219 = vsub.s32 %v216, %v218
    %v220 = vrot.slane %v209, %v219
    %v221 = vlaneseq
    %v222 = vshrl.u32 %v221, 7
    %v223 = vsub.s32 %v216, %v222
    %v224 = vrot.slane %v212, %v223
    %vm225 = vcmask 1041409
    %v226 = vsel %vm225, %v224, %v220
    %vm228 = vcmask 58368
    %v229 = vsel %vm228, %v226, -inf
    %230 = vmax.xlane.f32.xlu0 %v229
    %v231 = vpop.xlane.xlu0 %230
    %v233 = vlaneseq
    %v234 = vshrl.u32 %v233, 7
    %v235 = vsub.s32 0, %v234
    %v236 = vrot.slane %v231, %v235
    %v237 = vlaneseq
    %v238 = vshrl.u32 %v237, 7
    %v239 = vsub.s32 1, %v238
    %v240 = vrot.slane %v231, %v239
    %v243 = vsub.f32 %v209, %v236
    %v244 = vsub.f32 %v212, %v240
    %v245 = vmul.f32 %v243, 1.442695
    %v246 = vpow.pop %v245
    %v247 = vmul.f32 %v244, 1.442695
    %v248 = vpow.pop %v247
    %251 = vset.pattern.permute.xlu0 0
    %252 = vperm.xlu0 %251, %v246
    %v253 = vpop.permute.xlu0 %252
    %254 = vset.pattern.permute.xlu0 0
    %255 = vperm.xlu0 %254, %v248
    %v256 = vpop.permute.xlu0 %255
    %v257 = vlaneseq
    %v258 = vshrl.u32 %v257, 7
    %v259 = vsub.s32 %v216, %v258
    %v260 = vrot.slane %v253, %v259
    %v261 = vlaneseq
    %v262 = vshrl.u32 %v261, 7
    %v263 = vsub.s32 %v216, %v262
    %v264 = vrot.slane %v256, %v263
    %v265 = vsel %vm225, %v264, %v260
    %v267 = vsel %vm228, %v265, 0.0
    %268 = vadd.xlane.f32.xlu0 %v267
    %v269 = vpop.xlane.xlu0 %268
    %v271 = vlaneseq
    %v272 = vshrl.u32 %v271, 7
    %v273 = vsub.s32 0, %v272
    %v274 = vrot.slane %v269, %v273
    %v275 = vlaneseq
    %v276 = vshrl.u32 %v275, 7
    %v277 = vsub.s32 1, %v276
    %v278 = vrot.slane %v269, %v277
    %v281 = vrcp.pop %v274
    %v282 = vmul.f32 %v246, %v281
    %v283 = vrcp.pop %v278
    %v284 = vmul.f32 %v248, %v283
    %286 = vset.pattern.permute.xlu0 0
    %287 = vperm.xlu0 %286, %v282
    %v288 = vpop.permute.xlu0 %287
    %291 = vset.pattern.permute.xlu0 0
    %292 = vperm.xlu0 %291, %v284
    %v293 = vpop.permute.xlu0 %292
    %v295 = vmul.f32 %v288, %v72
    %v296 = vmul.f32 %v293, %v73
    %v297 = vsel %vm78, %v295, 0.0
    %v298 = vrot.slane %v297, 4
    %v299 = vadd.f32 %v297, %v298
    %v300 = vrot.slane %v299, 2
    %v301 = vadd.f32 %v299, %v300
    %v302 = vrot.slane %v301, 1
    %v303 = vadd.f32 %v301, %v302
    %v304 = vsel %vm78, %v296, 0.0
    %v305 = vrot.slane %v304, 4
    %v306 = vadd.f32 %v304, %v305
    %v307 = vrot.slane %v306, 2
    %v308 = vadd.f32 %v306, %v307
    %v309 = vrot.slane %v308, 1
    %v310 = vadd.f32 %v308, %v309
    %v313 = vsel %vm225, %v310, %v303
    %vm315 = vcmask 254976
    %316 = vst.msk [vmem:[#allocation10] sm:$0x3] %vm315, %v313
    %v317 = vlaneseq
    %v318 = vshrl.u32 %v317, 7
    %v319 = vsub.s32 %v216, %v318
    %v320 = vrot.slane %v288, %v319
    %v321 = vlaneseq
    %v322 = vshrl.u32 %v321, 7
    %v323 = vsub.s32 %v216, %v322
    %v324 = vrot.slane %v293, %v323
    %v325 = vsel %vm225, %v324, %v320
    %327 = vst.msk [vmem:[#allocation11] sm:$0x3] %vm228, %v325
    // Predicated region
    $region34: #{tpu_custom_call.1} parent=1 // pred_check
      _
    $region35: #{tpu_custom_call.1} parent=1 // pred_check_branch
      %329 = sbr.rel (0) target = $region37
    $region36: #{tpu_custom_call.1} parent=1 // pred_region
      %s331 = ssub.s32 32, 32
      %332 = vsyncadd [#allocation4], %s331
      %s334 = sshll.u32 [#allocation10], 4
      %s335 = int_to_ptr.vmem [resolvable:$true] %s334
      %337 = dma.vmem_to_hbm [thread:$0]  %s335, 32, %s4, [#allocation4]
    $region37: #{tpu_custom_call.1} parent=1 // pred_fallthru
      _
    // Predicated region
    $region38: #{tpu_custom_call.1} parent=1 // pred_check
      _
    $region39: #{tpu_custom_call.1} parent=1 // pred_check_branch
      %339 = sbr.rel (0) target = $region41
    $region40: #{tpu_custom_call.1} parent=1 // pred_region
      %s341 = ssub.s32 32, 32
      %342 = vsyncadd [#allocation12], %s341
      %s344 = sshll.u32 [#allocation11], 4
      %s345 = int_to_ptr.vmem [resolvable:$true] %s344
      %347 = dma.vmem_to_hbm [thread:$0]  %s345, 32, %s5, [#allocation12]
    $region41: #{tpu_custom_call.1} parent=1 // pred_fallthru
      _
    // Predicated region
    $region42: #{tpu_custom_call.1} parent=1 // pred_check
      _
    $region43: #{tpu_custom_call.1} parent=1 // pred_check_branch
      %349 = sbr.rel (0) target = $region45
    $region44: #{tpu_custom_call.1} parent=1 // pred_region
      %350 = dma.done [#allocation4], 32
    $region45: #{tpu_custom_call.1} parent=1 // pred_fallthru
      _
    // Predicated region
    $region46: #{tpu_custom_call.1} parent=1 // pred_check
      _
    $region47: #{tpu_custom_call.1} parent=1 // pred_check_branch
      %352 = sbr.rel (0) target = $region49
    $region48: #{tpu_custom_call.1} parent=1 // pred_region
      %353 = dma.done [#allocation12], 32
    $region49: #{tpu_custom_call.1} parent=1 // pred_fallthru
      _
    %354 = vsyncpa [#allocation3], 1
    %355 = vsyncpa [#allocation6], 1
    %356 = vsyncpa [#allocation9], 1
    %357 = vsyncpa [#allocation4], 1
    %358 = vsyncpa [#allocation12], 1

</llo_original>
